<compile_context>
chip_gen: v7x
topology: tpu7x:2x2x1
jax: 0.10.0
libtpu: 0.0.40
codegen_flags: <defaults>
</compile_context>

<pallas_src>
import jax
import jax.numpy as jnp
from jax import lax
from jax.experimental import pallas as pl
from jax.experimental.pallas import tpu as pltpu


def _round_up(n, m):
    return ((n + m - 1) // m) * m


def _head_kernel(x_ref, w_ref, b_ref, o_ref):
    # Transposed linear: contract H of w (H, C) with H of x (blk, H)
    #   -> logits^T with shape (C, blk), accumulated in f32 on the MXU.
    # (C=2 uses <2% of the MXU result tile, but the kernel is HBM-bound on x, so MXU
    #  utilization is irrelevant; the transposed form keeps the output lane-dense.)
    logits_t = lax.dot_general(
        w_ref[...],
        x_ref[...],
        dimension_numbers=(((0,), (1,)), ((), ())),
        preferred_element_type=jnp.float32,
    ) + b_ref[...].astype(jnp.float32)  # bias (C, 1) broadcasts over the batch lanes

    # Numerically stable log_softmax over the class axis (axis 0), in f32.
    # (A C=2 softplus rewrite would drop the XLU reductions, but they hide under the DMA.)
    m = jnp.max(logits_t, axis=0, keepdims=True)
    shifted = logits_t - m
    lse = jnp.log(jnp.sum(jnp.exp(shifted), axis=0, keepdims=True))
    o_ref[...] = (shifted - lse).astype(o_ref.dtype)


def _choose_tiling(B, row_mult, desired_blk):
    """Pick (blk, B_pad): the per-step batch tile and the padded batch.

    * Tiny batches get one full-extent tile (the lane rule is satisfied by "full dim").
    * Otherwise tiles are 128-multiples (lane-dense output stores) and the grid has >= 2
      steps so the "parallel" batch axis shards across both TensorCores on v7x, with the
      tile capped at `desired_blk` and sized to keep batch padding small.
    """
    B_min = _round_up(B, row_mult)
    if B_min < 256:
        return B_min, B_min
    B128 = _round_up(B, 128)
    n_steps = max(2, pl.cdiv(B128, desired_blk))
    blk = min(desired_blk, _round_up(pl.cdiv(B128, n_steps), 128))
    return blk, _round_up(B, blk)


def classifier_head(x, w, b, *, block_b=2048):
    """x: (B, H) pooled features (f32 or bf16 -- do not upcast bf16, x dominates HBM
    traffic); w: (H, C); b: (C,).  Returns log-probs (B, C) in f32."""
    B, H = x.shape
    H2, C = w.shape
    assert H == H2
    assert block_b % 128 == 0  # lane-dense output tiles whenever the grid has >1 step

    # Sublane granularity of the x tile: 8 rows for 4-byte dtypes, 16 for 2-byte dtypes.
    row_mult = 16 if x.dtype.itemsize == 2 else 8

    blk, B_pad = _choose_tiling(B, row_mult, block_b)
    if B_pad != B:
        x = jnp.pad(x, ((0, B_pad - B), (0, 0)))

    b2 = b.reshape(C, 1)  # column bias for the transposed logits

    # Scoped-VMEM budget: triple-buffered x tiles + double-buffered output tiles +
    # single-buffered weights, with headroom.  Cap at ~7/8 of this chip's physical VMEM
    # (128 MiB on v5e/v6e, 64 MiB per-TC on v7x).
    x_tile_bytes = blk * H * x.dtype.itemsize
    o_tile_bytes = 8 * blk * 4  # (C, blk) f32 tile, sublane-padded to 8
    w_bytes = _round_up(H, 8) * 128 * w.dtype.itemsize + 8 * 128 * 4
    needed = 3 * x_tile_bytes + 2 * o_tile_bytes + w_bytes + (2 << 20)
    try:
        vmem_cap = pltpu.get_tpu_info().vmem_capacity_bytes
    except Exception:
        vmem_cap = 64 << 20  # conservative fallback: v7x per-TC VMEM
    vmem_limit = int(min(max(needed, 32 << 20), (vmem_cap * 7) // 8))

    grid = (B_pad // blk,)
    cost = pl.CostEstimate(
        flops=2 * B_pad * H * C,
        transcendentals=B_pad * (C + 1),
        bytes_accessed=(B_pad * H * x.dtype.itemsize
                        + C * B_pad * 4
                        + H * C * w.dtype.itemsize
                        + C * 4),
    )

    def run(multi_buffered):
        if multi_buffered:
            in_specs = [
                # batch-tiled activations, triple-buffered to hide DMA issue/wait bubbles
                pl.BlockSpec((blk, H), lambda i: (i, 0), pipeline_mode=pl.Buffered(3)),
                # weight/bias: constant index_map -> fetched once, single buffer suffices
                pl.BlockSpec((H, C), lambda i: (0, 0), pipeline_mode=pl.Buffered(1)),
                pl.BlockSpec((C, 1), lambda i: (0, 0), pipeline_mode=pl.Buffered(1)),
            ]
        else:
            in_specs = [
                pl.BlockSpec((blk, H), lambda i: (i, 0)),
                pl.BlockSpec((H, C), lambda i: (0, 0)),
                pl.BlockSpec((C, 1), lambda i: (0, 0)),
            ]
        return pl.pallas_call(
            _head_kernel,
            out_shape=jax.ShapeDtypeStruct((C, B_pad), jnp.float32),
            grid_spec=pltpu.PrefetchScalarGridSpec(
                num_scalar_prefetch=0,
                grid=grid,
                in_specs=in_specs,
                # lane-dense transposed output tile: last dim = blk (128-multiple or full)
                out_specs=pl.BlockSpec((C, blk), lambda i: (0, i)),
            ),
            compiler_params=pltpu.CompilerParams(
                dimension_semantics=("parallel",),  # shard batch grid across TCs (v7x)
                vmem_limit_bytes=vmem_limit,
            ),
            cost_estimate=cost,
        )(x, w, b2)

    try:
        out_t = run(multi_buffered=True)
    except Exception:
        # TODO(synk): pipeline_mode=pl.Buffered unsupported on this jax build; fall back to
        # the default double-buffered pipeline (correctness identical, slightly less overlap).
        out_t = run(multi_buffered=False)

    # Tiny (C, B) slab: drop batch padding and transpose back in plain XLA.
    return out_t[:, :B].T


if __name__ == "__main__":
    C = 2

    def make_inputs(key, B, H, dtype=jnp.float32):
        kx, kw, kb = jax.random.split(key, 3)
        # Synthetic pooled encoder output (stand-in for RobertaModel(...).pooler_output).
        x = jax.random.normal(kx, (B, H), dtype=dtype)
        # Deterministic Linear(H, 2) init (uniform, PyTorch-like bound).
        bound = 1.0 / (H ** 0.5)
        w = jax.random.uniform(kw, (H, C), minval=-bound, maxval=bound, dtype=dtype)
        b = jax.random.uniform(kb, (C,), minval=-bound, maxval=bound, dtype=jnp.float32)
        return x, w, b

    # Small case: batch=8, hidden=32 (single full-extent tile path).
    B, H = 8, 32
    x, w, b = make_inputs(jax.random.PRNGKey(0), B, H)
    log_probs = jax.block_until_ready(classifier_head(x, w, b))
    ref = jax.nn.log_softmax(x @ w + b, axis=-1)
    assert log_probs.shape == (B, C)
    assert jnp.allclose(log_probs, ref, atol=1e-5), "mismatch vs reference (small)"

    # Ragged larger batch: exercises batch padding + the multi-step 128-multiple tile path.
    B2, H2 = 300, 64
    x2, w2, b2 = make_inputs(jax.random.PRNGKey(1), B2, H2)
    log_probs2 = jax.block_until_ready(classifier_head(x2, w2, b2))
    ref2 = jax.nn.log_softmax(x2 @ w2 + b2, axis=-1)
    assert log_probs2.shape == (B2, C)
    assert jnp.allclose(log_probs2, ref2, atol=1e-5), "mismatch vs reference (large)"

    print("KERNEL_OK")
</pallas_src>

<mosaic_0001>
module attributes {stable_mosaic.version = 11 : i64} {
  func.func @_head_kernel(%arg0: i32, %arg1: memref<8x32xf32, #tpu.memory_space<vmem>>, %arg2: memref<32x2xf32, #tpu.memory_space<vmem>>, %arg3: memref<2x1xf32, #tpu.memory_space<vmem>>, %arg4: memref<2x8xf32, #tpu.memory_space<vmem>>) attributes {dimension_semantics = [#tpu.dimension_semantics<parallel>], iteration_bounds = array<i64: 1>, scalar_prefetch = 0 : i64, scratch_operands = 0 : i64, tpu.core_type = #tpu.core_type<tc>, window_params = [{transform_indices = @transform_0, window_bounds = array<i64: 8, 32>}, {pipeline_mode = #tpu.pipeline_mode<synchronous>, transform_indices = @transform_1, window_bounds = array<i64: 32, 2>}, {pipeline_mode = #tpu.pipeline_mode<synchronous>, transform_indices = @transform_2, window_bounds = array<i64: 2, 1>}, {transform_indices = @transform_3, window_bounds = array<i64: 2, 8>}]} {
    %c0 = arith.constant 0 : index
    %c0_0 = arith.constant 0 : index
    %0 = vector.load %arg2[%c0, %c0_0] : memref<32x2xf32, #tpu.memory_space<vmem>>, vector<32x2xf32>
    %c0_1 = arith.constant 0 : index
    %c0_2 = arith.constant 0 : index
    %1 = vector.load %arg1[%c0_1, %c0_2] : memref<8x32xf32, #tpu.memory_space<vmem>>, vector<8x32xf32>
    %cst = arith.constant dense<0.000000e+00> : vector<2x8xf32>
    %2 = tpu.matmul %0, %1, %cst {dimension_numbers = #tpu.dot_dimension_numbers<[0], [1], [1], [0], [0, 1, 1, 0], [], []>} : vector<32x2xf32>, vector<8x32xf32>, vector<2x8xf32> -> vector<2x8xf32>
    %c0_3 = arith.constant 0 : index
    %c0_4 = arith.constant 0 : index
    %3 = vector.load %arg3[%c0_3, %c0_4] : memref<2x1xf32, #tpu.memory_space<vmem>>, vector<2x1xf32>
    %4 = vector.broadcast %3 : vector<2x1xf32> to vector<2x8xf32>
    %5 = arith.addf %2, %4 : vector<2x8xf32>
    %cst_5 = arith.constant dense<0xFF800000> : vector<8xf32>
    %6 = vector.multi_reduction <maximumf>, %5, %cst_5 [0] : vector<2x8xf32> to vector<8xf32>
    %7 = vector.shape_cast %6 : vector<8xf32> to vector<1x8xf32>
    %8 = vector.broadcast %7 : vector<1x8xf32> to vector<2x8xf32>
    %9 = arith.subf %5, %8 : vector<2x8xf32>
    %10 = math.exp %9 : vector<2x8xf32>
    %cst_6 = arith.constant dense<0.000000e+00> : vector<8xf32>
    %11 = vector.multi_reduction <add>, %10, %cst_6 [0] : vector<2x8xf32> to vector<8xf32>
    %12 = vector.shape_cast %11 : vector<8xf32> to vector<1x8xf32>
    %13 = math.log %12 : vector<1x8xf32>
    %14 = vector.broadcast %13 : vector<1x8xf32> to vector<2x8xf32>
    %15 = arith.subf %9, %14 : vector<2x8xf32>
    %c0_7 = arith.constant 0 : index
    %c0_8 = arith.constant 0 : index
    %16 = vector.load %arg4[%c0_7, %c0_8] : memref<2x8xf32, #tpu.memory_space<vmem>>, vector<2x8xf32>
    tpu.vector_store %arg4[%c0_7, %c0_8], %15 {strides = array<i32>} : memref<2x8xf32, #tpu.memory_space<vmem>>, vector<2x8xf32>,
    return
  }
  func.func @transform_0(%arg0: i32) -> (i32, i32) {
    %c0_i32 = arith.constant 0 : i32
    %c0_i32_0 = arith.constant 0 : i32
    return %arg0, %c0_i32 : i32, i32
  }
  func.func @transform_1(%arg0: i32) -> (i32, i32) {
    %c0_i32 = arith.constant 0 : i32
    %c0_i32_0 = arith.constant 0 : i32
    %c0_i32_1 = arith.constant 0 : i32
    return %c0_i32, %c0_i32_0 : i32, i32
  }
  func.func @transform_2(%arg0: i32) -> (i32, i32) {
    %c0_i32 = arith.constant 0 : i32
    %c0_i32_0 = arith.constant 0 : i32
    %c0_i32_1 = arith.constant 0 : i32
    return %c0_i32, %c0_i32_0 : i32, i32
  }
  func.func @transform_3(%arg0: i32) -> (i32, i32) {
    %c0_i32 = arith.constant 0 : i32
    %c0_i32_0 = arith.constant 0 : i32
    return %c0_i32, %arg0 : i32, i32
  }
}

</mosaic_0001>

<llo_original>
// kernel: tpu_custom_call.1
$region0: #{tpu_custom_call.1}
  #allocation0 [shape = 'u32[]', space=smem, size = 0x4, offset = 0x4, fixed_abs, tag = 'smem constant byte address 0x4 - core index']
  #allocation1 [shape = 'u32[144,128]{1,0:T(1,128)}', space=vmem, size = 0x12000, scoped, tag = 'internal scratch']
  %s0 = inlined_call_operand.vmem [shape: f32[8,32], index: 0, kind: input, shape index: {}]
  %s1 = inlined_call_operand.vmem [shape: f32[32,2], index: 1, kind: input, shape index: {}]
  %s2 = inlined_call_operand.vmem [shape: f32[2,1], index: 2, kind: input, shape index: {}]
  %s3 = inlined_call_operand.hbm [shape: f32[2,8], index: 3, kind: output, shape index: {}]
  %s4 = sld [smem:[#allocation0]]
  $region22: #{tpu_custom_call.1} parent=0
    _
  %s6 = ssub.s32 1, %s4
  %s7 = scalar_select 0, %s6, %s4
  $region1: #{tpu_custom_call.1} parent=0
    #allocation2 [shape = 'u8[1024]{0}', space=vmem, size = 0x400, scoped, tag = 'output window, operand 0, single buffered']
    #allocation3 [shape = 's32[1]{0}', space=sflag, size = 0x4, scoped, tag = 'scoped memory for tpu_custom_call.1']
    %8 = vsyncpa [#allocation3], 0
    // Predicated region
    $region2: #{tpu_custom_call.1} parent=1 // pred_check
      _
    $region3: #{tpu_custom_call.1} parent=1 // pred_check_branch
      %10 = sbr.rel (0) target = $region5
    $region4: #{tpu_custom_call.1} parent=1 // pred_region
      _
    $region5: #{tpu_custom_call.1} parent=1 // pred_fallthru
      _
    // Predicated region
    $region6: #{tpu_custom_call.1} parent=1 // pred_check
      _
    $region7: #{tpu_custom_call.1} parent=1 // pred_check_branch
      %12 = sbr.rel (0) target = $region9
    $region8: #{tpu_custom_call.1} parent=1 // pred_region
      _
    $region9: #{tpu_custom_call.1} parent=1 // pred_fallthru
      _
    // Predicated region
    $region10: #{tpu_custom_call.1} parent=1 // pred_check
      _
    $region11: #{tpu_custom_call.1} parent=1 // pred_check_branch
      %14 = sbr.rel (0) target = $region13
    $region12: #{tpu_custom_call.1} parent=1 // pred_region
      _
    $region13: #{tpu_custom_call.1} parent=1 // pred_fallthru
      _
    %v15 = vld [vmem:[%s1] sm:$0xff]
    %v16 = vld [vmem:[%s1 + $0x8] sm:$0xff]
    %v17 = vld [vmem:[%s1 + $0x10] sm:$0xff]
    %v18 = vld [vmem:[%s1 + $0x18] sm:$0xff]
    %v19 = vld [vmem:[%s0] sm:$0xff]
    %v20 = vld [vmem:[%s2] sm:$0x3]
    %22 = vset.pattern.permute.xlu0 0
    %23 = vperm.xlu0 %22, %v20
    %v24 = vpop.permute.xlu0 %23
    %26 = vxpose.xlu0.b32.start [1/16] %v15, 128
    %27 = vxpose.xlu0.b32.cont [2/16] %v16, 128
    %28 = vxpose.xlu0.b32.cont [3/16] %v17, 128
    %29 = vxpose.xlu0.b32.cont [4/16] %v18, 128
    %30 = vxpose.xlu0.b32.cont [5/16] 0.0, 128
    %31 = vxpose.xlu0.b32.cont [6/16] 0.0, 128
    %32 = vxpose.xlu0.b32.cont [7/16] 0.0, 128
    %33 = vxpose.xlu0.b32.cont [8/16] 0.0, 128
    %34 = vxpose.xlu0.b32.cont [9/16] 0.0, 128
    %35 = vxpose.xlu0.b32.cont [10/16] 0.0, 128
    %36 = vxpose.xlu0.b32.cont [11/16] 0.0, 128
    %37 = vxpose.xlu0.b32.cont [12/16] 0.0, 128
    %38 = vxpose.xlu0.b32.cont [13/16] 0.0, 128
    %39 = vxpose.xlu0.b32.cont [14/16] 0.0, 128
    %40 = vxpose.xlu0.b32.cont [15/16] 0.0, 128
    %41 = vxpose.xlu0.b32.end [16/16] 0.0, 128
    %v42 = vpop.trf.xlu0
    %v43 = vpop.trf.xlu0
    %v44 = vpop.trf.xlu0
    %v45 = vpop.trf.xlu0
    %v46 = vpop.trf.xlu0
    %v47 = vpop.trf.xlu0
    %v48 = vpop.trf.xlu0
    %v49 = vpop.trf.xlu0
    %v50 = vpop.trf.xlu0
    %v51 = vpop.trf.xlu0
    %v52 = vpop.trf.xlu0
    %v53 = vpop.trf.xlu0
    %v54 = vpop.trf.xlu0
    %v55 = vpop.trf.xlu0
    %v56 = vpop.trf.xlu0
    %v57 = vpop.trf.xlu0
    %vm58 = vcmask 261120
    %v60 = vsel %vm58, %v42, 0
    %v63 = vsel %vm58, %v19, 0
    %65 = vmatprep.subr.mxu0 0.0
    %66 = vmatpush1.xpose.msra.mxu0 %v63
    %67 = vmatprep.subr.mxu0 0.0
    %68 = vmatpush1.xpose.msra.mxu0 0.0
    %69 = vmatprep.subr.mxu0 0.0
    %70 = vmatpush1.xpose.msra.mxu0 0.0
    %71 = vmatprep.subr.mxu0 0.0
    %72 = vmatpush1.xpose.msra.mxu0 0.0
    %73 = vmatprep.subr.mxu0 0.0
    %74 = vmatpush1.xpose.msra.mxu0 0.0
    %75 = vmatprep.subr.mxu0 0.0
    %76 = vmatpush1.xpose.msra.mxu0 0.0
    %77 = vmatprep.subr.mxu0 0.0
    %78 = vmatpush1.xpose.msra.mxu0 0.0
    %79 = vmatprep.subr.mxu0 0.0
    %80 = vmatpush1.xpose.msra.mxu0 0.0
    %81 = vmatprep.subr.mxu0 0.0
    %82 = vmatpush1.xpose.msra.mxu0 0.0
    %83 = vmatprep.subr.mxu0 0.0
    %84 = vmatpush1.xpose.msra.mxu0 0.0
    %85 = vmatprep.subr.mxu0 0.0
    %86 = vmatpush1.xpose.msra.mxu0 0.0
    %87 = vmatprep.subr.mxu0 0.0
    %88 = vmatpush1.xpose.msra.mxu0 0.0
    %89 = vmatprep.subr.mxu0 0.0
    %90 = vmatpush1.xpose.msra.mxu0 0.0
    %91 = vmatprep.subr.mxu0 0.0
    %92 = vmatpush1.xpose.msra.mxu0 0.0
    %93 = vmatprep.subr.mxu0 0.0
    %94 = vmatpush1.xpose.msra.mxu0 0.0
    %95 = vmatprep.subr.mxu0 0.0
    %96 = vmatpush1.xpose.msra.mxu0 0.0
    %97 = vmatprep.subr.mxu0 0.0
    %98 = vmatpush1.xpose.msra.mxu0 0.0
    %99 = vmatprep.subr.mxu0 0.0
    %100 = vmatpush1.xpose.msra.mxu0 0.0
    %101 = vmatprep.subr.mxu0 0.0
    %102 = vmatpush1.xpose.msra.mxu0 0.0
    %103 = vmatprep.subr.mxu0 0.0
    %104 = vmatpush1.xpose.msra.mxu0 0.0
    %105 = vmatprep.subr.mxu0 0.0
    %106 = vmatpush1.xpose.msra.mxu0 0.0
    %107 = vmatprep.subr.mxu0 0.0
    %108 = vmatpush1.xpose.msra.mxu0 0.0
    %109 = vmatprep.subr.mxu0 0.0
    %110 = vmatpush1.xpose.msra.mxu0 0.0
    %111 = vmatprep.subr.mxu0 0.0
    %112 = vmatpush1.xpose.msra.mxu0 0.0
    %113 = vmatprep.subr.mxu0 0.0
    %114 = vmatpush1.xpose.msra.mxu0 0.0
    %115 = vmatprep.subr.mxu0 0.0
    %116 = vmatpush1.xpose.msra.mxu0 0.0
    %117 = vmatprep.subr.mxu0 0.0
    %118 = vmatpush1.xpose.msra.mxu0 0.0
    %119 = vmatprep.subr.mxu0 0.0
    %120 = vmatpush1.xpose.msra.mxu0 0.0
    %121 = vmatprep.subr.mxu0 0.0
    %122 = vmatpush1.xpose.msra.mxu0 0.0
    %123 = vmatprep.subr.mxu0 0.0
    %124 = vmatpush1.xpose.msra.mxu0 0.0
    %125 = vmatprep.subr.mxu0 0.0
    %126 = vmatpush1.xpose.msra.mxu0 0.0
    %127 = vmatprep.subr.mxu0 0.0
    %128 = vmatpush1.xpose.msra.mxu0 0.0
    %129 = vmatprep.mubr.f32.mxu0 0.0
    %130 = vmatmul.mubr.f32.gmra.mrb[0].mxu0 %v60
    %v131 = vpop.f32.mrb[0].mxu0
    %v132 = vadd.f32 %v24, %v131
    %v133 = vpop.f32.mrb[0].mxu0
    %134 = vdwg.mxu0
    %vm135 = vcmask 58368
    %v136 = vsel %vm135, %v132, -inf
    %v137 = vrot.slane %v136, 4
    %v138 = vmax.f32 %v136, %v137
    %v139 = vrot.slane %v138, 2
    %v140 = vmax.f32 %v138, %v139
    %v141 = vrot.slane %v140, 1
    %v142 = vmax.f32 %v140, %v141
    %v143 = vsub.f32 %v132, %v142
    %v144 = vmul.f32 %v143, 1.442695
    %v145 = vpow.pop %v144
    %v146 = vsel %vm135, %v145, 0.0
    %v147 = vrot.slane %v146, 4
    %v148 = vadd.f32 %v146, %v147
    %v149 = vrot.slane %v148, 2
    %v150 = vadd.f32 %v148, %v149
    %v151 = vrot.slane %v150, 1
    %v152 = vadd.f32 %v150, %v151
    %v153 = vlog2.pop %v152
    %v154 = vmul.f32 %v153, 0.6931472
    %v155 = vsub.f32 %v143, %v154
    %156 = vst.msk [vmem:[#allocation2] sm:$0x3] %vm135, %v155
    // Predicated region
    $region14: #{tpu_custom_call.1} parent=1 // pred_check
      _
    $region15: #{tpu_custom_call.1} parent=1 // pred_check_branch
      %158 = sbr.rel (0) target = $region17
    $region16: #{tpu_custom_call.1} parent=1 // pred_region
      %s160 = ssub.s32 32, 32
      %161 = vsyncadd [#allocation3], %s160
      %s163 = sshll.u32 [#allocation2], 4
      %s164 = int_to_ptr.vmem [resolvable:$true] %s163
      %166 = dma.vmem_to_hbm [thread:$0]  %s164, 32, %s3, [#allocation3]
    $region17: #{tpu_custom_call.1} parent=1 // pred_fallthru
      _
    // Predicated region
    $region18: #{tpu_custom_call.1} parent=1 // pred_check
      _
    $region19: #{tpu_custom_call.1} parent=1 // pred_check_branch
      %168 = sbr.rel (0) target = $region21
    $region20: #{tpu_custom_call.1} parent=1 // pred_region
      %169 = dma.done [#allocation3], 32
    $region21: #{tpu_custom_call.1} parent=1 // pred_fallthru
      _
    %170 = vsyncpa [#allocation3], 1

</llo_original>
